<compile_context>
chip_gen: v5e
topology: v5e:2x2
jax: 0.10.0
libtpu: 0.0.40
codegen_flags: <defaults>
</compile_context>

<pallas_src>
import jax
import jax.numpy as jnp
from jax.experimental import pallas as pl
from jax.experimental.pallas import tpu as pltpu

D_IN = 768
D_HID = 384
D_OUT = 5
D_OUT_PAD = 128   # lane-dense padded output width


def _round_up(x, m):
    return ((x + m - 1) // m) * m


def _choose_batch_tile(batch, tb_max):
    """Batch tile that bounds padding waste to <8 rows per tile."""
    tb_max = max(8, _round_up(tb_max, 8))
    b8 = _round_up(batch, 8)
    n_tiles = pl.cdiv(b8, tb_max)
    # v7x has 2 TensorCores: make sure the "parallel" batch axis has >= 2 grid
    # steps whenever the batch is big enough to split (no effect on v5e/v6e).
    if n_tiles == 1 and b8 >= 16:
        n_tiles = 2
    tb = min(_round_up(pl.cdiv(batch, n_tiles), 8), tb_max)
    return tb


def projector_kernel(x_ref, w1_ref, b1_ref, w2_ref, b2_ref, out_ref):
    # x_ref:  (TB, 768) f32      w1_ref: (768, 384) bf16   b1_ref: (1, 384) f32
    # w2_ref: (384, 128) bf16    b2_ref: (1, 128) f32      out_ref: (TB, 128) f32
    x = x_ref[...].astype(jnp.bfloat16)
    h = jnp.dot(x, w1_ref[...], preferred_element_type=jnp.float32)
    h = jnp.maximum(h + b1_ref[...], 0.0)                 # Linear(768,384) + ReLU
    y = jnp.dot(h.astype(jnp.bfloat16), w2_ref[...],
                preferred_element_type=jnp.float32)        # Linear(384,5) (padded)
    out_ref[...] = y + b2_ref[...]


def prepare_projector_params(w1, b1, w2, b2):
    """One-time parameter prep (hoisted out of the per-call path).

    w1: (768, 384), b1: (384,), w2: (384, 5), b2: (5,)  — (in, out) layout.
    """
    w1b = w1.astype(jnp.bfloat16)
    w2p = (jnp.zeros((D_HID, D_OUT_PAD), dtype=jnp.bfloat16)
           .at[:, :D_OUT].set(w2.astype(jnp.bfloat16)))
    b1_2d = b1.reshape(1, D_HID).astype(jnp.float32)
    b2p = (jnp.zeros((1, D_OUT_PAD), dtype=jnp.float32)
           .at[0, :D_OUT].set(b2.astype(jnp.float32)))
    return w1b, b1_2d, w2p, b2p


def projector(x, params, *, tb_max=1024, out_padded=False):
    """x: (B, 768) f32; params from prepare_projector_params()."""
    w1b, b1_2d, w2p, b2p = params
    batch = x.shape[0]

    tb = _choose_batch_tile(batch, tb_max)
    grid = (pl.cdiv(batch, tb),)   # ragged last block handled by Pallas

    cost = pl.CostEstimate(
        flops=2 * batch * (D_IN * D_HID + D_HID * D_OUT_PAD),
        transcendentals=0,
        bytes_accessed=(batch * (D_IN + D_OUT_PAD) * 4
                        + w1b.size * 2 + w2p.size * 2
                        + (b1_2d.size + b2p.size) * 4),
    )

    y_pad = pl.pallas_call(
        projector_kernel,
        out_shape=jax.ShapeDtypeStruct((batch, D_OUT_PAD), jnp.float32),
        grid_spec=pltpu.PrefetchScalarGridSpec(
            num_scalar_prefetch=0,
            grid=grid,
            in_specs=[
                # Activations: tiled over batch, double-buffered by Pallas.
                pl.BlockSpec((tb, D_IN), lambda i: (i, 0)),
                # Weights / biases: same block every step -> resident in VMEM.
                pl.BlockSpec((D_IN, D_HID), lambda i: (0, 0)),
                pl.BlockSpec((1, D_HID), lambda i: (0, 0)),
                pl.BlockSpec((D_HID, D_OUT_PAD), lambda i: (0, 0)),
                pl.BlockSpec((1, D_OUT_PAD), lambda i: (0, 0)),
            ],
            out_specs=pl.BlockSpec((tb, D_OUT_PAD), lambda i: (i, 0)),
        ),
        compiler_params=pltpu.CompilerParams(
            dimension_semantics=("parallel",),
            # v5e's scoped default is 16 MiB; 32 MiB is safe on v5e/v6e/v7x for
            # tb<=1024 (2x3 MiB x + 2x0.5 MiB out + ~1.3 MiB weights + temps).
            vmem_limit_bytes=32 * 1024 * 1024,
        ),
        cost_estimate=cost,
    )(x, w1b, b1_2d, w2p, b2p)

    if out_padded:
        return y_pad          # (B, 128) slab, first 5 lanes valid
    return y_pad[:, :D_OUT]   # (B, 5)


def reference(x, w1, b1, w2, b2):
    h = jnp.maximum(x @ w1 + b1, 0.0)
    return h @ w2 + b2


if __name__ == "__main__":
    key = jax.random.PRNGKey(0)
    k_x, k_w1, k_b1, k_w2, k_b2, k_x2, k_x3 = jax.random.split(key, 7)

    # Parameters (nn.Linear(768,384) / nn.Linear(384,5)), stored as (in, out).
    w1 = jax.random.normal(k_w1, (D_IN, D_HID), dtype=jnp.float32) * 0.02
    b1 = jax.random.normal(k_b1, (D_HID,), dtype=jnp.float32) * 0.02
    w2 = jax.random.normal(k_w2, (D_HID, D_OUT), dtype=jnp.float32) * 0.02
    b2 = jax.random.normal(k_b2, (D_OUT,), dtype=jnp.float32) * 0.02

    params = prepare_projector_params(w1, b1, w2, b2)

    # bf16-input / f32-accumulate matmuls vs f32 reference -> relaxed tolerance.
    ATOL, RTOL = 2e-2, 2e-2

    # Case 1: small batch, single tile.
    B1 = 8
    x1 = jax.random.normal(k_x, (B1, D_IN), dtype=jnp.float32)
    y1 = jax.block_until_ready(projector(x1, params))
    y1_ref = reference(x1, w1, b1, w2, b2)
    assert y1.shape == (B1, D_OUT), y1.shape
    assert jnp.allclose(y1, y1_ref, atol=ATOL, rtol=RTOL), float(
        jnp.max(jnp.abs(y1 - y1_ref)))

    # Case 2: non-multiple-of-8 batch, default tile -> 2-way split (v7x path)
    # with a ragged last block and no wrapper padding.
    B2 = 52
    x2 = jax.random.normal(k_x2, (B2, D_IN), dtype=jnp.float32)
    y2 = jax.block_until_ready(projector(x2, params))
    y2_ref = reference(x2, w1, b1, w2, b2)
    assert y2.shape == (B2, D_OUT), y2.shape
    assert jnp.allclose(y2, y2_ref, atol=ATOL, rtol=RTOL), float(
        jnp.max(jnp.abs(y2 - y2_ref)))

    # Case 3: larger non-multiple batch with a small tile cap to exercise the
    # multi-step pipelined grid with a ragged final block.
    B3 = 300
    x3 = jax.random.normal(k_x3, (B3, D_IN), dtype=jnp.float32)
    y3 = jax.block_until_ready(projector(x3, params, tb_max=128))
    y3_ref = reference(x3, w1, b1, w2, b2)
    assert y3.shape == (B3, D_OUT), y3.shape
    assert jnp.allclose(y3, y3_ref, atol=ATOL, rtol=RTOL), float(
        jnp.max(jnp.abs(y3 - y3_ref)))

    print("KERNEL_OK")
</pallas_src>

<mosaic_0001>
module attributes {stable_mosaic.version = 11 : i64} {
  func.func @projector_kernel(%arg0: i32, %arg1: memref<8x768xf32, #tpu.memory_space<vmem>>, %arg2: memref<768x384xbf16, #tpu.memory_space<vmem>>, %arg3: memref<1x384xf32, #tpu.memory_space<vmem>>, %arg4: memref<384x128xbf16, #tpu.memory_space<vmem>>, %arg5: memref<1x128xf32, #tpu.memory_space<vmem>>, %arg6: memref<8x128xf32, #tpu.memory_space<vmem>>) attributes {dimension_semantics = [#tpu.dimension_semantics<parallel>], iteration_bounds = array<i64: 1>, scalar_prefetch = 0 : i64, scratch_operands = 0 : i64, tpu.core_type = #tpu.core_type<tc>, window_params = [{transform_indices = @transform_0, window_bounds = array<i64: 8, 768>}, {pipeline_mode = #tpu.pipeline_mode<synchronous>, transform_indices = @transform_1, window_bounds = array<i64: 768, 384>}, {pipeline_mode = #tpu.pipeline_mode<synchronous>, transform_indices = @transform_2, window_bounds = array<i64: 1, 384>}, {pipeline_mode = #tpu.pipeline_mode<synchronous>, transform_indices = @transform_3, window_bounds = array<i64: 384, 128>}, {pipeline_mode = #tpu.pipeline_mode<synchronous>, transform_indices = @transform_4, window_bounds = array<i64: 1, 128>}, {transform_indices = @transform_5, window_bounds = array<i64: 8, 128>}]} {
    %c0 = arith.constant 0 : index
    %c0_0 = arith.constant 0 : index
    %0 = vector.load %arg1[%c0, %c0_0] : memref<8x768xf32, #tpu.memory_space<vmem>>, vector<8x768xf32>
    %1 = arith.truncf %0 : vector<8x768xf32> to vector<8x768xbf16>
    %c0_1 = arith.constant 0 : index
    %c0_2 = arith.constant 0 : index
    %2 = vector.load %arg2[%c0_1, %c0_2] : memref<768x384xbf16, #tpu.memory_space<vmem>>, vector<768x384xbf16>
    %cst = arith.constant dense<0.000000e+00> : vector<8x384xf32>
    %3 = tpu.matmul %1, %2, %cst {dimension_numbers = #tpu.dot_dimension_numbers<[1], [0], [0], [1], [0, 0, 1, 1], [], []>} : vector<8x768xbf16>, vector<768x384xbf16>, vector<8x384xf32> -> vector<8x384xf32>
    %c0_3 = arith.constant 0 : index
    %c0_4 = arith.constant 0 : index
    %4 = vector.load %arg3[%c0_3, %c0_4] : memref<1x384xf32, #tpu.memory_space<vmem>>, vector<1x384xf32>
    %5 = vector.broadcast %4 : vector<1x384xf32> to vector<8x384xf32>
    %6 = arith.addf %3, %5 : vector<8x384xf32>
    %cst_5 = arith.constant 0.000000e+00 : f32
    %7 = vector.broadcast %cst_5 : f32 to vector<8x384xf32>
    %8 = arith.maximumf %6, %7 : vector<8x384xf32>
    %9 = arith.truncf %8 : vector<8x384xf32> to vector<8x384xbf16>
    %c0_6 = arith.constant 0 : index
    %c0_7 = arith.constant 0 : index
    %10 = vector.load %arg4[%c0_6, %c0_7] : memref<384x128xbf16, #tpu.memory_space<vmem>>, vector<384x128xbf16>
    %cst_8 = arith.constant dense<0.000000e+00> : vector<8x128xf32>
    %11 = tpu.matmul %9, %10, %cst_8 {dimension_numbers = #tpu.dot_dimension_numbers<[1], [0], [0], [1], [0, 0, 1, 1], [], []>} : vector<8x384xbf16>, vector<384x128xbf16>, vector<8x128xf32> -> vector<8x128xf32>
    %c0_9 = arith.constant 0 : index
    %c0_10 = arith.constant 0 : index
    %12 = vector.load %arg5[%c0_9, %c0_10] : memref<1x128xf32, #tpu.memory_space<vmem>>, vector<1x128xf32>
    %13 = vector.broadcast %12 : vector<1x128xf32> to vector<8x128xf32>
    %14 = arith.addf %11, %13 : vector<8x128xf32>
    %c0_11 = arith.constant 0 : index
    %c0_12 = arith.constant 0 : index
    %15 = vector.load %arg6[%c0_11, %c0_12] : memref<8x128xf32, #tpu.memory_space<vmem>>, vector<8x128xf32>
    tpu.vector_store %arg6[%c0_11, %c0_12], %14 {strides = array<i32>} : memref<8x128xf32, #tpu.memory_space<vmem>>, vector<8x128xf32>,
    return
  }
  func.func @transform_0(%arg0: i32) -> (i32, i32) {
    %c0_i32 = arith.constant 0 : i32
    %c0_i32_0 = arith.constant 0 : i32
    return %arg0, %c0_i32 : i32, i32
  }
  func.func @transform_1(%arg0: i32) -> (i32, i32) {
    %c0_i32 = arith.constant 0 : i32
    %c0_i32_0 = arith.constant 0 : i32
    %c0_i32_1 = arith.constant 0 : i32
    return %c0_i32, %c0_i32_0 : i32, i32
  }
  func.func @transform_2(%arg0: i32) -> (i32, i32) {
    %c0_i32 = arith.constant 0 : i32
    %c0_i32_0 = arith.constant 0 : i32
    %c0_i32_1 = arith.constant 0 : i32
    return %c0_i32, %c0_i32_0 : i32, i32
  }
  func.func @transform_3(%arg0: i32) -> (i32, i32) {
    %c0_i32 = arith.constant 0 : i32
    %c0_i32_0 = arith.constant 0 : i32
    %c0_i32_1 = arith.constant 0 : i32
    return %c0_i32, %c0_i32_0 : i32, i32
  }
  func.func @transform_4(%arg0: i32) -> (i32, i32) {
    %c0_i32 = arith.constant 0 : i32
    %c0_i32_0 = arith.constant 0 : i32
    %c0_i32_1 = arith.constant 0 : i32
    return %c0_i32, %c0_i32_0 : i32, i32
  }
  func.func @transform_5(%arg0: i32) -> (i32, i32) {
    %c0_i32 = arith.constant 0 : i32
    %c0_i32_0 = arith.constant 0 : i32
    return %arg0, %c0_i32 : i32, i32
  }
}

</mosaic_0001>

<llo_original>
// kernel: tpu_custom_call.1
$region0: #{tpu_custom_call.1}
  #allocation0 [shape = 'u32[]', space=smem, size = 0x4, offset = 0x4, fixed_abs, tag = 'smem constant byte address 0x4 - core index']
  #allocation1 [shape = 'u32[72,128]{1,0:T(1,128)}', space=vmem, size = 0x9000, scoped, tag = 'internal scratch']
  %s0 = inlined_call_operand.hbm [shape: f32[8,768], index: 0, kind: input, shape index: {}]
  %s1 = inlined_call_operand.hbm [shape: bf16[768,384], index: 1, kind: input, shape index: {}]
  %s2 = inlined_call_operand.hbm [shape: f32[1,384], index: 2, kind: input, shape index: {}]
  %s3 = inlined_call_operand.hbm [shape: bf16[384,128], index: 3, kind: input, shape index: {}]
  %s4 = inlined_call_operand.vmem [shape: f32[1,128], index: 4, kind: input, shape index: {}]
  %s5 = inlined_call_operand.hbm [shape: f32[8,128], index: 5, kind: output, shape index: {}]
  %s6 = sld [smem:[#allocation0]]
  $region46: #{tpu_custom_call.1} parent=0
    _
  %s8 = ssub.s32 1, %s6
  %s9 = scalar_select 0, %s8, %s6
  $region1: #{tpu_custom_call.1} parent=0
    #allocation2 [shape = 'u8[24576]{0}', space=vmem, size = 0x6000, scoped, tag = 'input window, operand 0, single buffered']
    #allocation3 [shape = 's32[1]{0}', space=sflag, size = 0x4, scoped, tag = 'scoped memory for tpu_custom_call.1']
    #allocation4 [shape = 's32[1]{0}', space=sflag, size = 0x4, scoped, tag = 'scoped memory for tpu_custom_call.1']
    #allocation5 [shape = 'u8[589824]{0}', space=vmem, size = 0x90000, scoped, tag = 'input window, operand 1, single buffered']
    #allocation6 [shape = 's32[1]{0}', space=sflag, size = 0x4, scoped, tag = 'scoped memory for tpu_custom_call.1']
    #allocation7 [shape = 'u8[1536]{0}', space=vmem, size = 0x800, scoped, tag = 'input window, operand 2, single buffered']
    #allocation8 [shape = 'u8[98304]{0}', space=vmem, size = 0x18000, scoped, tag = 'input window, operand 3, single buffered']
    #allocation9 [shape = 's32[1]{0}', space=sflag, size = 0x4, scoped, tag = 'scoped memory for tpu_custom_call.1']
    #allocation10 [shape = 'u8[4096]{0}', space=vmem, size = 0x1000, scoped, tag = 'output window, operand 0, single buffered']
    %10 = vsyncpa [#allocation3], 0
    %11 = vsyncpa [#allocation6], 0
    %12 = vsyncpa [#allocation9], 0
    %13 = vsyncpa [#allocation4], 0
    // Predicated region
    $region2: #{tpu_custom_call.1} parent=1 // pred_check
      _
    $region3: #{tpu_custom_call.1} parent=1 // pred_check_branch
      %15 = sbr.rel (0) target = $region5
    $region4: #{tpu_custom_call.1} parent=1 // pred_region
      %17 = vsyncadd [#allocation3], 0
      %s19 = sshll.u32 %s0, 4
      %s20 = int_to_ptr.hbm [resolvable:$true] %s19
      %s21 = sshll.u32 [#allocation2], 4
      %s22 = int_to_ptr.vmem [resolvable:$true] %s21
      %24 = dma.hbm_to_vmem [thread:$0]  %s20, 768, %s22, [#allocation3]
    $region5: #{tpu_custom_call.1} parent=1 // pred_fallthru
      _
    // Predicated region
    $region6: #{tpu_custom_call.1} parent=1 // pred_check
      _
    $region7: #{tpu_custom_call.1} parent=1 // pred_check_branch
      %26 = sbr.rel (0) target = $region9
    $region8: #{tpu_custom_call.1} parent=1 // pred_region
      %28 = vsyncadd [#allocation6], 0
      %s29 = sshll.u32 %s1, 4
      %s30 = int_to_ptr.hbm [resolvable:$true] %s29
      %s31 = sshll.u32 [#allocation5], 4
      %s32 = int_to_ptr.vmem [resolvable:$true] %s31
      %37 = dma.hbm_to_vmem [thread:$0]  %s30, 18432, %s32, [#allocation6], 192, 192, 12
    $region9: #{tpu_custom_call.1} parent=1 // pred_fallthru
      _
    // Predicated region
    $region10: #{tpu_custom_call.1} parent=1 // pred_check
      _
    $region11: #{tpu_custom_call.1} parent=1 // pred_check_branch
      %39 = sbr.rel (0) target = $region13
    $region12: #{tpu_custom_call.1} parent=1 // pred_region
      %41 = vsyncadd [#allocation6], 0
      %s43 = sshll.u32 %s2, 4
      %s44 = int_to_ptr.hbm [resolvable:$true] %s43
      %s45 = sshll.u32 [#allocation7], 4
      %s46 = int_to_ptr.vmem [resolvable:$true] %s45
      %48 = dma.hbm_to_vmem [thread:$0]  %s44, 48, %s46, [#allocation6]
    $region13: #{tpu_custom_call.1} parent=1 // pred_fallthru
      _
    // Predicated region
    $region14: #{tpu_custom_call.1} parent=1 // pred_check
      _
    $region15: #{tpu_custom_call.1} parent=1 // pred_check_branch
      %50 = sbr.rel (0) target = $region17
    $region16: #{tpu_custom_call.1} parent=1 // pred_region
      %52 = vsyncadd [#allocation9], 0
      %s53 = sshll.u32 %s3, 4
      %s54 = int_to_ptr.hbm [resolvable:$true] %s53
      %s55 = sshll.u32 [#allocation8], 4
      %s56 = int_to_ptr.vmem [resolvable:$true] %s55
      %61 = dma.hbm_to_vmem [thread:$0]  %s54, 3072, %s56, [#allocation9], 64, 64, 4
    $region17: #{tpu_custom_call.1} parent=1 // pred_fallthru
      _
    // Predicated region
    $region18: #{tpu_custom_call.1} parent=1 // pred_check
      _
    $region19: #{tpu_custom_call.1} parent=1 // pred_check_branch
      %63 = sbr.rel (0) target = $region21
    $region20: #{tpu_custom_call.1} parent=1 // pred_region
      _
    $region21: #{tpu_custom_call.1} parent=1 // pred_fallthru
      _
    // Predicated region
    $region22: #{tpu_custom_call.1} parent=1 // pred_check
      _
    $region23: #{tpu_custom_call.1} parent=1 // pred_check_branch
      %65 = sbr.rel (0) target = $region25
    $region24: #{tpu_custom_call.1} parent=1 // pred_region
      %67 = dma.done [#allocation3], 768
    $region25: #{tpu_custom_call.1} parent=1 // pred_fallthru
      _
    // Predicated region
    $region26: #{tpu_custom_call.1} parent=1 // pred_check
      _
    $region27: #{tpu_custom_call.1} parent=1 // pred_check_branch
      %69 = sbr.rel (0) target = $region29
    $region28: #{tpu_custom_call.1} parent=1 // pred_region
      %71 = dma.done [#allocation6], 18432
    $region29: #{tpu_custom_call.1} parent=1 // pred_fallthru
      _
    // Predicated region
    $region30: #{tpu_custom_call.1} parent=1 // pred_check
      _
    $region31: #{tpu_custom_call.1} parent=1 // pred_check_branch
      %73 = sbr.rel (0) target = $region33
    $region32: #{tpu_custom_call.1} parent=1 // pred_region
      %75 = dma.done [#allocation6], 48
    $region33: #{tpu_custom_call.1} parent=1 // pred_fallthru
      _
    // Predicated region
    $region34: #{tpu_custom_call.1} parent=1 // pred_check
      _
    $region35: #{tpu_custom_call.1} parent=1 // pred_check_branch
      %77 = sbr.rel (0) target = $region37
    $region36: #{tpu_custom_call.1} parent=1 // pred_region
      %79 = dma.done [#allocation9], 3072
    $region37: #{tpu_custom_call.1} parent=1 // pred_fallthru
      _
    %v80 = vld [vmem:[#allocation2] sm:$0xff]
    %v81 = vld [vmem:[#allocation2 + $0x8] sm:$0xff]
    %v82 = vld [vmem:[#allocation2 + $0x10] sm:$0xff]
    %v83 = vld [vmem:[#allocation2 + $0x18] sm:$0xff]
    %v84 = vld [vmem:[#allocation2 + $0x20] sm:$0xff]
    %v85 = vld [vmem:[#allocation2 + $0x28] sm:$0xff]
    %v86 = vpack.c.bf16 %v80, %v80
    %v87 = vpack.c.bf16 %v81, %v81
    %v88 = vpack.c.bf16 %v82, %v82
    %v89 = vpack.c.bf16 %v83, %v83
    %v90 = vpack.c.bf16 %v84, %v84
    %v91 = vpack.c.bf16 %v85, %v85
    %v92 = vld [vmem:[#allocation5] sm:$0xff]
    %v93 = vld [vmem:[#allocation5 + $0x8] sm:$0xf]
    %v94 = vld [vmem:[#allocation5 + $0xc] sm:$0xff]
    %v95 = vld [vmem:[#allocation5 + $0x14] sm:$0xf]
    %v96 = vld [vmem:[#allocation5 + $0x18] sm:$0xff]
    %v97 = vld [vmem:[#allocation5 + $0x20] sm:$0xf]
    %v98 = vld [vmem:[#allocation5 + $0x24] sm:$0xff]
    %v99 = vld [vmem:[#allocation5 + $0x2c] sm:$0xf]
    %v100 = vld [vmem:[#allocation5 + $0x30] sm:$0xff]
    %v101 = vld [vmem:[#allocation5 + $0x38] sm:$0xf]
    %v102 = vld [vmem:[#allocation5 + $0x3c] sm:$0xff]
    %v103 = vld [vmem:[#allocation5 + $0x44] sm:$0xf]
    %v104 = vld [vmem:[#allocation5 + $0x48] sm:$0xff]
    %v105 = vld [vmem:[#allocation5 + $0x50] sm:$0xf]
    %v106 = vld [vmem:[#allocation5 + $0x54] sm:$0xff]
    %v107 = vld [vmem:[#allocation5 + $0x5c] sm:$0xf]
    %v108 = vld [vmem:[#allocation5 + $0x60] sm:$0xff]
    %v109 = vld [vmem:[#allocation5 + $0x68] sm:$0xf]
    %v110 = vld [vmem:[#allocation5 + $0x6c] sm:$0xff]
    %v111 = vld [vmem:[#allocation5 + $0x74] sm:$0xf]
    %v112 = vld [vmem:[#allocation5 + $0x78] sm:$0xff]
    %v113 = vld [vmem:[#allocation5 + $0x80] sm:$0xf]
    %v114 = vld [vmem:[#allocation5 + $0x84] sm:$0xff]
    %v115 = vld [vmem:[#allocation5 + $0x8c] sm:$0xf]
    %v116 = vld [vmem:[#allocation5 + $0x90] sm:$0xff]
    %v117 = vld [vmem:[#allocation5 + $0x98] sm:$0xf]
    %v118 = vld [vmem:[#allocation5 + $0x9c] sm:$0xff]
    %v119 = vld [vmem:[#allocation5 + $0xa4] sm:$0xf]
    %v120 = vld [vmem:[#allocation5 + $0xa8] sm:$0xff]
    %v121 = vld [vmem:[#allocation5 + $0xb0] sm:$0xf]
    %v122 = vld [vmem:[#allocation5 + $0xb4] sm:$0xff]
    %v123 = vld [vmem:[#allocation5 + $0xbc] sm:$0xf]
    %v124 = vld [vmem:[#allocation5 + $0xc0] sm:$0xff]
    %v125 = vld [vmem:[#allocation5 + $0xc8] sm:$0xf]
    %v126 = vld [vmem:[#allocation5 + $0xcc] sm:$0xff]
    %v127 = vld [vmem:[#allocation5 + $0xd4] sm:$0xf]
    %v128 = vld [vmem:[#allocation5 + $0xd8] sm:$0xff]
    %v129 = vld [vmem:[#allocation5 + $0xe0] sm:$0xf]
    %v130 = vld [vmem:[#allocation5 + $0xe4] sm:$0xff]
    %v131 = vld [vmem:[#allocation5 + $0xec] sm:$0xf]
    %v132 = vld [vmem:[#allocation5 + $0xf0] sm:$0xff]
    %v133 = vld [vmem:[#allocation5 + $0xf8] sm:$0xf]
    %v134 = vld [vmem:[#allocation5 + $0xfc] sm:$0xff]
    %v135 = vld [vmem:[#allocation5 + $0x104] sm:$0xf]
    %v136 = vld [vmem:[#allocation5 + $0x108] sm:$0xff]
    %v137 = vld [vmem:[#allocation5 + $0x110] sm:$0xf]
    %v138 = vld [vmem:[#allocation5 + $0x114] sm:$0xff]
    %v139 = vld [vmem:[#allocation5 + $0x11c] sm:$0xf]
    %v140 = vld [vmem:[#allocation5 + $0x120] sm:$0xff]
    %v141 = vld [vmem:[#allocation5 + $0x128] sm:$0xf]
    %v142 = vld [vmem:[#allocation5 + $0x12c] sm:$0xff]
    %v143 = vld [vmem:[#allocation5 + $0x134] sm:$0xf]
    %v144 = vld [vmem:[#allocation5 + $0x138] sm:$0xff]
    %v145 = vld [vmem:[#allocation5 + $0x140] sm:$0xf]
    %v146 = vld [vmem:[#allocation5 + $0x144] sm:$0xff]
    %v147 = vld [vmem:[#allocation5 + $0x14c] sm:$0xf]
    %v148 = vld [vmem:[#allocation5 + $0x150] sm:$0xff]
    %v149 = vld [vmem:[#allocation5 + $0x158] sm:$0xf]
    %v150 = vld [vmem:[#allocation5 + $0x15c] sm:$0xff]
    %v151 = vld [vmem:[#allocation5 + $0x164] sm:$0xf]
    %v152 = vld [vmem:[#allocation5 + $0x168] sm:$0xff]
    %v153 = vld [vmem:[#allocation5 + $0x170] sm:$0xf]
    %v154 = vld [vmem:[#allocation5 + $0x174] sm:$0xff]
    %v155 = vld [vmem:[#allocation5 + $0x17c] sm:$0xf]
    %v156 = vld [vmem:[#allocation5 + $0x180] sm:$0xff]
    %v157 = vld [vmem:[#allocation5 + $0x188] sm:$0xf]
    %v158 = vld [vmem:[#allocation5 + $0x18c] sm:$0xff]
    %v159 = vld [vmem:[#allocation5 + $0x194] sm:$0xf]
    %v160 = vld [vmem:[#allocation5 + $0x198] sm:$0xff]
    %v161 = vld [vmem:[#allocation5 + $0x1a0] sm:$0xf]
    %v162 = vld [vmem:[#allocation5 + $0x1a4] sm:$0xff]
    %v163 = vld [vmem:[#allocation5 + $0x1ac] sm:$0xf]
    %v164 = vld [vmem:[#allocation5 + $0x1b0] sm:$0xff]
    %v165 = vld [vmem:[#allocation5 + $0x1b8] sm:$0xf]
    %v166 = vld [vmem:[#allocation5 + $0x1bc] sm:$0xff]
    %v167 = vld [vmem:[#allocation5 + $0x1c4] sm:$0xf]
    %v168 = vld [vmem:[#allocation5 + $0x1c8] sm:$0xff]
    %v169 = vld [vmem:[#allocation5 + $0x1d0] sm:$0xf]
    %v170 = vld [vmem:[#allocation5 + $0x1d4] sm:$0xff]
    %v171 = vld [vmem:[#allocation5 + $0x1dc] sm:$0xf]
    %v172 = vld [vmem:[#allocation5 + $0x1e0] sm:$0xff]
    %v173 = vld [vmem:[#allocation5 + $0x1e8] sm:$0xf]
    %v174 = vld [vmem:[#allocation5 + $0x1ec] sm:$0xff]
    %v175 = vld [vmem:[#allocation5 + $0x1f4] sm:$0xf]
    %v176 = vld [vmem:[#allocation5 + $0x1f8] sm:$0xff]
    %v177 = vld [vmem:[#allocation5 + $0x200] sm:$0xf]
    %v178 = vld [vmem:[#allocation5 + $0x204] sm:$0xff]
    %v179 = vld [vmem:[#allocation5 + $0x20c] sm:$0xf]
    %v180 = vld [vmem:[#allocation5 + $0x210] sm:$0xff]
    %v181 = vld [vmem:[#allocation5 + $0x218] sm:$0xf]
    %v182 = vld [vmem:[#allocation5 + $0x21c] sm:$0xff]
    %v183 = vld [vmem:[#allocation5 + $0x224] sm:$0xf]
    %v184 = vld [vmem:[#allocation5 + $0x228] sm:$0xff]
    %v185 = vld [vmem:[#allocation5 + $0x230] sm:$0xf]
    %v186 = vld [vmem:[#allocation5 + $0x234] sm:$0xff]
    %v187 = vld [vmem:[#allocation5 + $0x23c] sm:$0xf]
    %v188 = vld [vmem:[#allocation5 + $0x240] sm:$0xff]
    %v189 = vld [vmem:[#allocation5 + $0x248] sm:$0xf]
    %v190 = vld [vmem:[#allocation5 + $0x24c] sm:$0xff]
    %v191 = vld [vmem:[#allocation5 + $0x254] sm:$0xf]
    %v192 = vld [vmem:[#allocation5 + $0x258] sm:$0xff]
    %v193 = vld [vmem:[#allocation5 + $0x260] sm:$0xf]
    %v194 = vld [vmem:[#allocation5 + $0x264] sm:$0xff]
    %v195 = vld [vmem:[#allocation5 + $0x26c] sm:$0xf]
    %v196 = vld [vmem:[#allocation5 + $0x270] sm:$0xff]
    %v197 = vld [vmem:[#allocation5 + $0x278] sm:$0xf]
    %v198 = vld [vmem:[#allocation5 + $0x27c] sm:$0xff]
    %v199 = vld [vmem:[#allocation5 + $0x284] sm:$0xf]
    %v200 = vld [vmem:[#allocation5 + $0x288] sm:$0xff]
    %v201 = vld [vmem:[#allocation5 + $0x290] sm:$0xf]
    %v202 = vld [vmem:[#allocation5 + $0x294] sm:$0xff]
    %v203 = vld [vmem:[#allocation5 + $0x29c] sm:$0xf]
    %v204 = vld [vmem:[#allocation5 + $0x2a0] sm:$0xff]
    %v205 = vld [vmem:[#allocation5 + $0x2a8] sm:$0xf]
    %v206 = vld [vmem:[#allocation5 + $0x2ac] sm:$0xff]
    %v207 = vld [vmem:[#allocation5 + $0x2b4] sm:$0xf]
    %v208 = vld [vmem:[#allocation5 + $0x2b8] sm:$0xff]
    %v209 = vld [vmem:[#allocation5 + $0x2c0] sm:$0xf]
    %v210 = vld [vmem:[#allocation5 + $0x2c4] sm:$0xff]
    %v211 = vld [vmem:[#allocation5 + $0x2cc] sm:$0xf]
    %v212 = vld [vmem:[#allocation5 + $0x2d0] sm:$0xff]
    %v213 = vld [vmem:[#allocation5 + $0x2d8] sm:$0xf]
    %v214 = vld [vmem:[#allocation5 + $0x2dc] sm:$0xff]
    %v215 = vld [vmem:[#allocation5 + $0x2e4] sm:$0xf]
    %v216 = vld [vmem:[#allocation5 + $0x2e8] sm:$0xff]
    %v217 = vld [vmem:[#allocation5 + $0x2f0] sm:$0xf]
    %v218 = vld [vmem:[#allocation5 + $0x2f4] sm:$0xff]
    %v219 = vld [vmem:[#allocation5 + $0x2fc] sm:$0xf]
    %v220 = vld [vmem:[#allocation5 + $0x300] sm:$0xff]
    %v221 = vld [vmem:[#allocation5 + $0x308] sm:$0xf]
    %v222 = vld [vmem:[#allocation5 + $0x30c] sm:$0xff]
    %v223 = vld [vmem:[#allocation5 + $0x314] sm:$0xf]
    %v224 = vld [vmem:[#allocation5 + $0x318] sm:$0xff]
    %v225 = vld [vmem:[#allocation5 + $0x320] sm:$0xf]
    %v226 = vld [vmem:[#allocation5 + $0x324] sm:$0xff]
    %v227 = vld [vmem:[#allocation5 + $0x32c] sm:$0xf]
    %v228 = vld [vmem:[#allocation5 + $0x330] sm:$0xff]
    %v229 = vld [vmem:[#allocation5 + $0x338] sm:$0xf]
    %v230 = vld [vmem:[#allocation5 + $0x33c] sm:$0xff]
    %v231 = vld [vmem:[#allocation5 + $0x344] sm:$0xf]
    %v232 = vld [vmem:[#allocation5 + $0x348] sm:$0xff]
    %v233 = vld [vmem:[#allocation5 + $0x350] sm:$0xf]
    %v234 = vld [vmem:[#allocation5 + $0x354] sm:$0xff]
    %v235 = vld [vmem:[#allocation5 + $0x35c] sm:$0xf]
    %v236 = vld [vmem:[#allocation5 + $0x360] sm:$0xff]
    %v237 = vld [vmem:[#allocation5 + $0x368] sm:$0xf]
    %v238 = vld [vmem:[#allocation5 + $0x36c] sm:$0xff]
    %v239 = vld [vmem:[#allocation5 + $0x374] sm:$0xf]
    %v240 = vld [vmem:[#allocation5 + $0x378] sm:$0xff]
    %v241 = vld [vmem:[#allocation5 + $0x380] sm:$0xf]
    %v242 = vld [vmem:[#allocation5 + $0x384] sm:$0xff]
    %v243 = vld [vmem:[#allocation5 + $0x38c] sm:$0xf]
    %v244 = vld [vmem:[#allocation5 + $0x390] sm:$0xff]
    %v245 = vld [vmem:[#allocation5 + $0x398] sm:$0xf]
    %v246 = vld [vmem:[#allocation5 + $0x39c] sm:$0xff]
    %v247 = vld [vmem:[#allocation5 + $0x3a4] sm:$0xf]
    %v248 = vld [vmem:[#allocation5 + $0x3a8] sm:$0xff]
    %v249 = vld [vmem:[#allocation5 + $0x3b0] sm:$0xf]
    %v250 = vld [vmem:[#allocation5 + $0x3b4] sm:$0xff]
    %v251 = vld [vmem:[#allocation5 + $0x3bc] sm:$0xf]
    %v252 = vld [vmem:[#allocation5 + $0x3c0] sm:$0xff]
    %v253 = vld [vmem:[#allocation5 + $0x3c8] sm:$0xf]
    %v254 = vld [vmem:[#allocation5 + $0x3cc] sm:$0xff]
    %v255 = vld [vmem:[#allocation5 + $0x3d4] sm:$0xf]
    %v256 = vld [vmem:[#allocation5 + $0x3d8] sm:$0xff]
    %v257 = vld [vmem:[#allocation5 + $0x3e0] sm:$0xf]
    %v258 = vld [vmem:[#allocation5 + $0x3e4] sm:$0xff]
    %v259 = vld [vmem:[#allocation5 + $0x3ec] sm:$0xf]
    %v260 = vld [vmem:[#allocation5 + $0x3f0] sm:$0xff]
    %v261 = vld [vmem:[#allocation5 + $0x3f8] sm:$0xf]
    %v262 = vld [vmem:[#allocation5 + $0x3fc] sm:$0xff]
    %v263 = vld [vmem:[#allocation5 + $0x404] sm:$0xf]
    %v264 = vld [vmem:[#allocation5 + $0x408] sm:$0xff]
    %v265 = vld [vmem:[#allocation5 + $0x410] sm:$0xf]
    %v266 = vld [vmem:[#allocation5 + $0x414] sm:$0xff]
    %v267 = vld [vmem:[#allocation5 + $0x41c] sm:$0xf]
    %v268 = vld [vmem:[#allocation5 + $0x420] sm:$0xff]
    %v269 = vld [vmem:[#allocation5 + $0x428] sm:$0xf]
    %v270 = vld [vmem:[#allocation5 + $0x42c] sm:$0xff]
    %v271 = vld [vmem:[#allocation5 + $0x434] sm:$0xf]
    %v272 = vld [vmem:[#allocation5 + $0x438] sm:$0xff]
    %v273 = vld [vmem:[#allocation5 + $0x440] sm:$0xf]
    %v274 = vld [vmem:[#allocation5 + $0x444] sm:$0xff]
    %v275 = vld [vmem:[#allocation5 + $0x44c] sm:$0xf]
    %v276 = vld [vmem:[#allocation5 + $0x450] sm:$0xff]
    %v277 = vld [vmem:[#allocation5 + $0x458] sm:$0xf]
    %v278 = vld [vmem:[#allocation5 + $0x45c] sm:$0xff]
    %v279 = vld [vmem:[#allocation5 + $0x464] sm:$0xf]
    %v280 = vld [vmem:[#allocation5 + $0x468] sm:$0xff]
    %v281 = vld [vmem:[#allocation5 + $0x470] sm:$0xf]
    %v282 = vld [vmem:[#allocation5 + $0x474] sm:$0xff]
    %v283 = vld [vmem:[#allocation5 + $0x47c] sm:$0xf]
    %v284 = vld [vmem:[#allocation7] sm:$0x7]
    %v286 = vperm.slane %v284, 0
    %v287 = vperm.slane %v284, 1
    %v288 = vperm.slane %v284, 2
    %v484 = vunpack.c.l.b16 %v92
    %v485 = vunpack.c.h.b16 %v92
    %v486 = vunpack.c.l.b16 %v93
    %v487 = vunpack.c.l.b16 %v94
    %v488 = vunpack.c.h.b16 %v94
    %v489 = vunpack.c.l.b16 %v95
    %v490 = vunpack.c.l.b16 %v96
    %v491 = vunpack.c.h.b16 %v96
    %v492 = vunpack.c.l.b16 %v97
    %v493 = vunpack.c.l.b16 %v98
    %v494 = vunpack.c.h.b16 %v98
    %v495 = vunpack.c.l.b16 %v99
    %v496 = vunpack.c.l.b16 %v100
    %v497 = vunpack.c.h.b16 %v100
    %v498 = vunpack.c.l.b16 %v101
    %v499 = vunpack.c.l.b16 %v102
    %v500 = vunpack.c.h.b16 %v102
    %v501 = vunpack.c.l.b16 %v103
    %v502 = vunpack.c.l.b16 %v104
    %v503 = vunpack.c.h.b16 %v104
    %v504 = vunpack.c.l.b16 %v105
    %v505 = vunpack.c.l.b16 %v106
    %v506 = vunpack.c.h.b16 %v106
    %v507 = vunpack.c.l.b16 %v107
    %v508 = vunpack.c.l.b16 %v108
    %v509 = vunpack.c.h.b16 %v108
    %v510 = vunpack.c.l.b16 %v109
    %v511 = vunpack.c.l.b16 %v110
    %v512 = vunpack.c.h.b16 %v110
    %v513 = vunpack.c.l.b16 %v111
    %v514 = vunpack.c.l.b16 %v112
    %v515 = vunpack.c.h.b16 %v112
    %v516 = vunpack.c.l.b16 %v113
    %v517 = vunpack.c.l.b16 %v114
    %v518 = vunpack.c.h.b16 %v114
    %v519 = vunpack.c.l.b16 %v115
    %v520 = vunpack.c.l.b16 %v116
    %v521 = vunpack.c.h.b16 %v116
    %v522 = vunpack.c.l.b16 %v117
    %v523 = vunpack.c.l.b16 %v118
    %v524 = vunpack.c.h.b16 %v118
    %v525 = vunpack.c.l.b16 %v119
    %v526 = vunpack.c.l.b16 %v120
    %v527 = vunpack.c.h.b16 %v120
    %v528 = vunpack.c.l.b16 %v121
    %v529 = vunpack.c.l.b16 %v122
    %v530 = vunpack.c.h.b16 %v122
    %v531 = vunpack.c.l.b16 %v123
    %v532 = vunpack.c.l.b16 %v124
    %v533 = vunpack.c.h.b16 %v124
    %v534 = vunpack.c.l.b16 %v125
    %v535 = vunpack.c.l.b16 %v126
    %v536 = vunpack.c.h.b16 %v126
    %v537 = vunpack.c.l.b16 %v127
    %v538 = vunpack.c.l.b16 %v128
    %v539 = vunpack.c.h.b16 %v128
    %v540 = vunpack.c.l.b16 %v129
    %v541 = vunpack.c.l.b16 %v130
    %v542 = vunpack.c.h.b16 %v130
    %v543 = vunpack.c.l.b16 %v131
    %v544 = vunpack.c.l.b16 %v132
    %v545 = vunpack.c.h.b16 %v132
    %v546 = vunpack.c.l.b16 %v133
    %v547 = vunpack.c.l.b16 %v134
    %v548 = vunpack.c.h.b16 %v134
    %v549 = vunpack.c.l.b16 %v135
    %v550 = vunpack.c.l.b16 %v136
    %v551 = vunpack.c.h.b16 %v136
    %v552 = vunpack.c.l.b16 %v137
    %v553 = vunpack.c.l.b16 %v138
    %v554 = vunpack.c.h.b16 %v138
    %v555 = vunpack.c.l.b16 %v139
    %v556 = vunpack.c.l.b16 %v140
    %v557 = vunpack.c.h.b16 %v140
    %v558 = vunpack.c.l.b16 %v141
    %v559 = vunpack.c.l.b16 %v142
    %v560 = vunpack.c.h.b16 %v142
    %v561 = vunpack.c.l.b16 %v143
    %v562 = vunpack.c.l.b16 %v144
    %v563 = vunpack.c.h.b16 %v144
    %v564 = vunpack.c.l.b16 %v145
    %v565 = vunpack.c.l.b16 %v146
    %v566 = vunpack.c.h.b16 %v146
    %v567 = vunpack.c.l.b16 %v147
    %v568 = vunpack.c.l.b16 %v148
    %v569 = vunpack.c.h.b16 %v148
    %v570 = vunpack.c.l.b16 %v149
    %v571 = vunpack.c.l.b16 %v150
    %v572 = vunpack.c.h.b16 %v150
    %v573 = vunpack.c.l.b16 %v151
    %v574 = vunpack.c.l.b16 %v152
    %v575 = vunpack.c.h.b16 %v152
    %v576 = vunpack.c.l.b16 %v153
    %v577 = vunpack.c.l.b16 %v154
    %v578 = vunpack.c.h.b16 %v154
    %v579 = vunpack.c.l.b16 %v155
    %v580 = vunpack.c.l.b16 %v156
    %v581 = vunpack.c.h.b16 %v156
    %v582 = vunpack.c.l.b16 %v157
    %v583 = vunpack.c.l.b16 %v158
    %v584 = vunpack.c.h.b16 %v158
    %v585 = vunpack.c.l.b16 %v159
    %v586 = vunpack.c.l.b16 %v160
    %v587 = vunpack.c.h.b16 %v160
    %v588 = vunpack.c.l.b16 %v161
    %v589 = vunpack.c.l.b16 %v162
    %v590 = vunpack.c.h.b16 %v162
    %v591 = vunpack.c.l.b16 %v163
    %v592 = vunpack.c.l.b16 %v164
    %v593 = vunpack.c.h.b16 %v164
    %v594 = vunpack.c.l.b16 %v165
    %v595 = vunpack.c.l.b16 %v166
    %v596 = vunpack.c.h.b16 %v166
    %v597 = vunpack.c.l.b16 %v167
    %v598 = vunpack.c.l.b16 %v168
    %v599 = vunpack.c.h.b16 %v168
    %v600 = vunpack.c.l.b16 %v169
    %v601 = vunpack.c.l.b16 %v170
    %v602 = vunpack.c.h.b16 %v170
    %v603 = vunpack.c.l.b16 %v171
    %v604 = vunpack.c.l.b16 %v172
    %v605 = vunpack.c.h.b16 %v172
    %v606 = vunpack.c.l.b16 %v173
    %v607 = vunpack.c.l.b16 %v174
    %v608 = vunpack.c.h.b16 %v174
    %v609 = vunpack.c.l.b16 %v175
    %v610 = vunpack.c.l.b16 %v176
    %v611 = vunpack.c.h.b16 %v176
    %v612 = vunpack.c.l.b16 %v177
    %v613 = vunpack.c.l.b16 %v178
    %v614 = vunpack.c.h.b16 %v178
    %v615 = vunpack.c.l.b16 %v179
    %v616 = vunpack.c.l.b16 %v180
    %v617 = vunpack.c.h.b16 %v180
    %v618 = vunpack.c.l.b16 %v181
    %v619 = vunpack.c.l.b16 %v182
    %v620 = vunpack.c.h.b16 %v182
    %v621 = vunpack.c.l.b16 %v183
    %v622 = vunpack.c.l.b16 %v184
    %v623 = vunpack.c.h.b16 %v184
    %v624 = vunpack.c.l.b16 %v185
    %v625 = vunpack.c.l.b16 %v186
    %v626 = vunpack.c.h.b16 %v186
    %v627 = vunpack.c.l.b16 %v187
    %v628 = vunpack.c.l.b16 %v188
    %v629 = vunpack.c.h.b16 %v188
    %v630 = vunpack.c.l.b16 %v189
    %v631 = vunpack.c.l.b16 %v190
    %v632 = vunpack.c.h.b16 %v190
    %v633 = vunpack.c.l.b16 %v191
    %v634 = vunpack.c.l.b16 %v192
    %v635 = vunpack.c.h.b16 %v192
    %v636 = vunpack.c.l.b16 %v193
    %v637 = vunpack.c.l.b16 %v194
    %v638 = vunpack.c.h.b16 %v194
    %v639 = vunpack.c.l.b16 %v195
    %v640 = vunpack.c.l.b16 %v196
    %v641 = vunpack.c.h.b16 %v196
    %v642 = vunpack.c.l.b16 %v197
    %v643 = vunpack.c.l.b16 %v198
    %v644 = vunpack.c.h.b16 %v198
    %v645 = vunpack.c.l.b16 %v199
    %v646 = vunpack.c.l.b16 %v200
    %v647 = vunpack.c.h.b16 %v200
    %v648 = vunpack.c.l.b16 %v201
    %v649 = vunpack.c.l.b16 %v202
    %v650 = vunpack.c.h.b16 %v202
    %v651 = vunpack.c.l.b16 %v203
    %v652 = vunpack.c.l.b16 %v204
    %v653 = vunpack.c.h.b16 %v204
    %v654 = vunpack.c.l.b16 %v205
    %v655 = vunpack.c.l.b16 %v206
    %v656 = vunpack.c.h.b16 %v206
    %v657 = vunpack.c.l.b16 %v207
    %v658 = vunpack.c.l.b16 %v208
    %v659 = vunpack.c.h.b16 %v208
    %v660 = vunpack.c.l.b16 %v209
    %v661 = vunpack.c.l.b16 %v210
    %v662 = vunpack.c.h.b16 %v210
    %v663 = vunpack.c.l.b16 %v211
    %v664 = vunpack.c.l.b16 %v212
    %v665 = vunpack.c.h.b16 %v212
    %v666 = vunpack.c.l.b16 %v213
    %v667 = vunpack.c.l.b16 %v214
    %v668 = vunpack.c.h.b16 %v214
    %v669 = vunpack.c.l.b16 %v215
    %v670 = vunpack.c.l.b16 %v216
    %v671 = vunpack.c.h.b16 %v216
    %v672 = vunpack.c.l.b16 %v217
    %v673 = vunpack.c.l.b16 %v218
    %v674 = vunpack.c.h.b16 %v218
    %v675 = vunpack.c.l.b16 %v219
    %v676 = vunpack.c.l.b16 %v220
    %v677 = vunpack.c.h.b16 %v220
    %v678 = vunpack.c.l.b16 %v221
    %v679 = vunpack.c.l.b16 %v222
    %v680 = vunpack.c.h.b16 %v222
    %v681 = vunpack.c.l.b16 %v223
    %v682 = vunpack.c.l.b16 %v224
    %v683 = vunpack.c.h.b16 %v224
    %v684 = vunpack.c.l.b16 %v225
    %v685 = vunpack.c.l.b16 %v226
    %v686 = vunpack.c.h.b16 %v226
    %v687 = vunpack.c.l.b16 %v227
    %v688 = vunpack.c.l.b16 %v228
    %v689 = vunpack.c.h.b16 %v228
    %v690 = vunpack.c.l.b16 %v229
    %v691 = vunpack.c.l.b16 %v230
    %v692 = vunpack.c.h.b16 %v230
    %v693 = vunpack.c.l.b16 %v231
    %v694 = vunpack.c.l.b16 %v232
    %v695 = vunpack.c.h.b16 %v232
    %v696 = vunpack.c.l.b16 %v233
    %v697 = vunpack.c.l.b16 %v234
    %v698 = vunpack.c.h.b16 %v234
    %v699 = vunpack.c.l.b16 %v235
    %v700 = vunpack.c.l.b16 %v236
    %v701 = vunpack.c.h.b16 %v236
    %v702 = vunpack.c.l.b16 %v237
    %v703 = vunpack.c.l.b16 %v238
    %v704 = vunpack.c.h.b16 %v238
    %v705 = vunpack.c.l.b16 %v239
    %v706 = vunpack.c.l.b16 %v240
    %v707 = vunpack.c.h.b16 %v240
    %v708 = vunpack.c.l.b16 %v241
    %v709 = vunpack.c.l.b16 %v242
    %v710 = vunpack.c.h.b16 %v242
    %v711 = vunpack.c.l.b16 %v243
    %v712 = vunpack.c.l.b16 %v244
    %v713 = vunpack.c.h.b16 %v244
    %v714 = vunpack.c.l.b16 %v245
    %v715 = vunpack.c.l.b16 %v246
    %v716 = vunpack.c.h.b16 %v246
    %v717 = vunpack.c.l.b16 %v247
    %v718 = vunpack.c.l.b16 %v248
    %v719 = vunpack.c.h.b16 %v248
    %v720 = vunpack.c.l.b16 %v249
    %v721 = vunpack.c.l.b16 %v250
    %v722 = vunpack.c.h.b16 %v250
    %v723 = vunpack.c.l.b16 %v251
    %v724 = vunpack.c.l.b16 %v252
    %v725 = vunpack.c.h.b16 %v252
    %v726 = vunpack.c.l.b16 %v253
    %v727 = vunpack.c.l.b16 %v254
    %v728 = vunpack.c.h.b16 %v254
    %v729 = vunpack.c.l.b16 %v255
    %v730 = vunpack.c.l.b16 %v256
    %v731 = vunpack.c.h.b16 %v256
    %v732 = vunpack.c.l.b16 %v257
    %v733 = vunpack.c.l.b16 %v258
    %v734 = vunpack.c.h.b16 %v258
    %v735 = vunpack.c.l.b16 %v259
    %v736 = vunpack.c.l.b16 %v260
    %v737 = vunpack.c.h.b16 %v260
    %v738 = vunpack.c.l.b16 %v261
    %v739 = vunpack.c.l.b16 %v262
    %v740 = vunpack.c.h.b16 %v262
    %v741 = vunpack.c.l.b16 %v263
    %v742 = vunpack.c.l.b16 %v264
    %v743 = vunpack.c.h.b16 %v264
    %v744 = vunpack.c.l.b16 %v265
    %v745 = vunpack.c.l.b16 %v266
    %v746 = vunpack.c.h.b16 %v266
    %v747 = vunpack.c.l.b16 %v267
    %v748 = vunpack.c.l.b16 %v268
    %v749 = vunpack.c.h.b16 %v268
    %v750 = vunpack.c.l.b16 %v269
    %v751 = vunpack.c.l.b16 %v270
    %v752 = vunpack.c.h.b16 %v270
    %v753 = vunpack.c.l.b16 %v271
    %v754 = vunpack.c.l.b16 %v272
    %v755 = vunpack.c.h.b16 %v272
    %v756 = vunpack.c.l.b16 %v273
    %v757 = vunpack.c.l.b16 %v274
    %v758 = vunpack.c.h.b16 %v274
    %v759 = vunpack.c.l.b16 %v275
    %v760 = vunpack.c.l.b16 %v276
    %v761 = vunpack.c.h.b16 %v276
    %v762 = vunpack.c.l.b16 %v277
    %v763 = vunpack.c.l.b16 %v278
    %v764 = vunpack.c.h.b16 %v278
    %v765 = vunpack.c.l.b16 %v279
    %v766 = vunpack.c.l.b16 %v280
    %v767 = vunpack.c.h.b16 %v280
    %v768 = vunpack.c.l.b16 %v281
    %v769 = vunpack.c.l.b16 %v282
    %v770 = vunpack.c.h.b16 %v282
    %v771 = vunpack.c.l.b16 %v283
    %v772 = vpack.c.b16 %v487, %v484
    %v773 = vpack.c.b16 %v488, %v485
    %v774 = vpack.c.b16 %v489, %v486
    %v775 = vpack.c.b16 %v493, %v490
    %v776 = vpack.c.b16 %v494, %v491
    %v777 = vpack.c.b16 %v495, %v492
    %v778 = vpack.c.b16 %v499, %v496
    %v779 = vpack.c.b16 %v500, %v497
    %v780 = vpack.c.b16 %v501, %v498
    %v781 = vpack.c.b16 %v505, %v502
    %v782 = vpack.c.b16 %v506, %v503
    %v783 = vpack.c.b16 %v507, %v504
    %v784 = vpack.c.b16 %v511, %v508
    %v785 = vpack.c.b16 %v512, %v509
    %v786 = vpack.c.b16 %v513, %v510
    %v787 = vpack.c.b16 %v517, %v514
    %v788 = vpack.c.b16 %v518, %v515
    %v789 = vpack.c.b16 %v519, %v516
    %v790 = vpack.c.b16 %v523, %v520
    %v791 = vpack.c.b16 %v524, %v521
    %v792 = vpack.c.b16 %v525, %v522
    %v793 = vpack.c.b16 %v529, %v526
    %v794 = vpack.c.b16 %v530, %v527
    %v795 = vpack.c.b16 %v531, %v528
    %v796 = vpack.c.b16 %v535, %v532
    %v797 = vpack.c.b16 %v536, %v533
    %v798 = vpack.c.b16 %v537, %v534
    %v799 = vpack.c.b16 %v541, %v538
    %v800 = vpack.c.b16 %v542, %v539
    %v801 = vpack.c.b16 %v543, %v540
    %v802 = vpack.c.b16 %v547, %v544
    %v803 = vpack.c.b16 %v548, %v545
    %v804 = vpack.c.b16 %v549, %v546
    %v805 = vpack.c.b16 %v553, %v550
    %v806 = vpack.c.b16 %v554, %v551
    %v807 = vpack.c.b16 %v555, %v552
    %v808 = vpack.c.b16 %v559, %v556
    %v809 = vpack.c.b16 %v560, %v557
    %v810 = vpack.c.b16 %v561, %v558
    %v811 = vpack.c.b16 %v565, %v562
    %v812 = vpack.c.b16 %v566, %v563
    %v813 = vpack.c.b16 %v567, %v564
    %v814 = vpack.c.b16 %v571, %v568
    %v815 = vpack.c.b16 %v572, %v569
    %v816 = vpack.c.b16 %v573, %v570
    %v817 = vpack.c.b16 %v577, %v574
    %v818 = vpack.c.b16 %v578, %v575
    %v819 = vpack.c.b16 %v579, %v576
    %v820 = vpack.c.b16 %v583, %v580
    %v821 = vpack.c.b16 %v584, %v581
    %v822 = vpack.c.b16 %v585, %v582
    %v823 = vpack.c.b16 %v589, %v586
    %v824 = vpack.c.b16 %v590, %v587
    %v825 = vpack.c.b16 %v591, %v588
    %v826 = vpack.c.b16 %v595, %v592
    %v827 = vpack.c.b16 %v596, %v593
    %v828 = vpack.c.b16 %v597, %v594
    %v829 = vpack.c.b16 %v601, %v598
    %v830 = vpack.c.b16 %v602, %v599
    %v831 = vpack.c.b16 %v603, %v600
    %v832 = vpack.c.b16 %v607, %v604
    %v833 = vpack.c.b16 %v608, %v605
    %v834 = vpack.c.b16 %v609, %v606
    %v835 = vpack.c.b16 %v613, %v610
    %v836 = vpack.c.b16 %v614, %v611
    %v837 = vpack.c.b16 %v615, %v612
    %v838 = vpack.c.b16 %v619, %v616
    %v839 = vpack.c.b16 %v620, %v617
    %v840 = vpack.c.b16 %v621, %v618
    %v841 = vpack.c.b16 %v625, %v622
    %v842 = vpack.c.b16 %v626, %v623
    %v843 = vpack.c.b16 %v627, %v624
    %v844 = vpack.c.b16 %v631, %v628
    %v845 = vpack.c.b16 %v632, %v629
    %v846 = vpack.c.b16 %v633, %v630
    %v847 = vpack.c.b16 %v637, %v634
    %v848 = vpack.c.b16 %v638, %v635
    %v849 = vpack.c.b16 %v639, %v636
    %v850 = vpack.c.b16 %v643, %v640
    %v851 = vpack.c.b16 %v644, %v641
    %v852 = vpack.c.b16 %v645, %v642
    %v853 = vpack.c.b16 %v649, %v646
    %v854 = vpack.c.b16 %v650, %v647
    %v855 = vpack.c.b16 %v651, %v648
    %v856 = vpack.c.b16 %v655, %v652
    %v857 = vpack.c.b16 %v656, %v653
    %v858 = vpack.c.b16 %v657, %v654
    %v859 = vpack.c.b16 %v661, %v658
    %v860 = vpack.c.b16 %v662, %v659
    %v861 = vpack.c.b16 %v663, %v660
    %v862 = vpack.c.b16 %v667, %v664
    %v863 = vpack.c.b16 %v668, %v665
    %v864 = vpack.c.b16 %v669, %v666
    %v865 = vpack.c.b16 %v673, %v670
    %v866 = vpack.c.b16 %v674, %v671
    %v867 = vpack.c.b16 %v675, %v672
    %v868 = vpack.c.b16 %v679, %v676
    %v869 = vpack.c.b16 %v680, %v677
    %v870 = vpack.c.b16 %v681, %v678
    %v871 = vpack.c.b16 %v685, %v682
    %v872 = vpack.c.b16 %v686, %v683
    %v873 = vpack.c.b16 %v687, %v684
    %v874 = vpack.c.b16 %v691, %v688
    %v875 = vpack.c.b16 %v692, %v689
    %v876 = vpack.c.b16 %v693, %v690
    %v877 = vpack.c.b16 %v697, %v694
    %v878 = vpack.c.b16 %v698, %v695
    %v879 = vpack.c.b16 %v699, %v696
    %v880 = vpack.c.b16 %v703, %v700
    %v881 = vpack.c.b16 %v704, %v701
    %v882 = vpack.c.b16 %v705, %v702
    %v883 = vpack.c.b16 %v709, %v706
    %v884 = vpack.c.b16 %v710, %v707
    %v885 = vpack.c.b16 %v711, %v708
    %v886 = vpack.c.b16 %v715, %v712
    %v887 = vpack.c.b16 %v716, %v713
    %v888 = vpack.c.b16 %v717, %v714
    %v889 = vpack.c.b16 %v721, %v718
    %v890 = vpack.c.b16 %v722, %v719
    %v891 = vpack.c.b16 %v723, %v720
    %v892 = vpack.c.b16 %v727, %v724
    %v893 = vpack.c.b16 %v728, %v725
    %v894 = vpack.c.b16 %v729, %v726
    %v895 = vpack.c.b16 %v733, %v730
    %v896 = vpack.c.b16 %v734, %v731
    %v897 = vpack.c.b16 %v735, %v732
    %v898 = vpack.c.b16 %v739, %v736
    %v899 = vpack.c.b16 %v740, %v737
    %v900 = vpack.c.b16 %v741, %v738
    %v901 = vpack.c.b16 %v745, %v742
    %v902 = vpack.c.b16 %v746, %v743
    %v903 = vpack.c.b16 %v747, %v744
    %v904 = vpack.c.b16 %v751, %v748
    %v905 = vpack.c.b16 %v752, %v749
    %v906 = vpack.c.b16 %v753, %v750
    %v907 = vpack.c.b16 %v757, %v754
    %v908 = vpack.c.b16 %v758, %v755
    %v909 = vpack.c.b16 %v759, %v756
    %v910 = vpack.c.b16 %v763, %v760
    %v911 = vpack.c.b16 %v764, %v761
    %v912 = vpack.c.b16 %v765, %v762
    %v913 = vpack.c.b16 %v769, %v766
    %v914 = vpack.c.b16 %v770, %v767
    %v915 = vpack.c.b16 %v771, %v768
    %1060 = vmatpush.bf16.msra.mxu0 %v793
    %1061 = vmatpush.bf16.msra.mxu0 %v790
    %1062 = vmatpush.bf16.msra.mxu0 %v787
    %1063 = vmatpush.bf16.msra.mxu0 %v784
    %1064 = vmatpush.bf16.msra.mxu0 %v781
    %1065 = vmatpush.bf16.msra.mxu0 %v778
    %1066 = vmatpush.bf16.msra.mxu0 %v775
    %1067 = vmatpush.bf16.msra.mxu0 %v772
    %1068 = vmatmul.bf16.gmra.mxu0 %v86
    %v1069 = vpop.f32.mrf.mxu0
    %v1070 = vadd.f32 %v286, %v1069
    %v1071 = vpop.f32.mrf.mxu0
    %1072 = vdwg.mxu0
    %1073 = vmatpush.bf16.msra.mxu0 %v817
    %1074 = vmatpush.bf16.msra.mxu0 %v814
    %1075 = vmatpush.bf16.msra.mxu0 %v811
    %1076 = vmatpush.bf16.msra.mxu0 %v808
    %1077 = vmatpush.bf16.msra.mxu0 %v805
    %1078 = vmatpush.bf16.msra.mxu0 %v802
    %1079 = vmatpush.bf16.msra.mxu0 %v799
    %1080 = vmatpush.bf16.msra.mxu0 %v796
    %1081 = vmatmul.bf16.gmra.mxu0 %v87
    %v1082 = vpop.f32.mrf.mxu0
    %v1083 = vadd.f32 %v1070, %v1082
    %v1084 = vpop.f32.mrf.mxu0
    %1085 = vdwg.mxu0
    %1086 = vmatpush.bf16.msra.mxu0 %v841
    %1087 = vmatpush.bf16.msra.mxu0 %v838
    %1088 = vmatpush.bf16.msra.mxu0 %v835
    %1089 = vmatpush.bf16.msra.mxu0 %v832
    %1090 = vmatpush.bf16.msra.mxu0 %v829
    %1091 = vmatpush.bf16.msra.mxu0 %v826
    %1092 = vmatpush.bf16.msra.mxu0 %v823
    %1093 = vmatpush.bf16.msra.mxu0 %v820
    %1094 = vmatmul.bf16.gmra.mxu0 %v88
    %v1095 = vpop.f32.mrf.mxu0
    %v1096 = vadd.f32 %v1083, %v1095
    %v1097 = vpop.f32.mrf.mxu0
    %1098 = vdwg.mxu0
    %1099 = vmatpush.bf16.msra.mxu0 %v865
    %1100 = vmatpush.bf16.msra.mxu0 %v862
    %1101 = vmatpush.bf16.msra.mxu0 %v859
    %1102 = vmatpush.bf16.msra.mxu0 %v856
    %1103 = vmatpush.bf16.msra.mxu0 %v853
    %1104 = vmatpush.bf16.msra.mxu0 %v850
    %1105 = vmatpush.bf16.msra.mxu0 %v847
    %1106 = vmatpush.bf16.msra.mxu0 %v844
    %1107 = vmatmul.bf16.gmra.mxu0 %v89
    %v1108 = vpop.f32.mrf.mxu0
    %v1109 = vadd.f32 %v1096, %v1108
    %v1110 = vpop.f32.mrf.mxu0
    %1111 = vdwg.mxu0
    %1112 = vmatpush.bf16.msra.mxu0 %v889
    %1113 = vmatpush.bf16.msra.mxu0 %v886
    %1114 = vmatpush.bf16.msra.mxu0 %v883
    %1115 = vmatpush.bf16.msra.mxu0 %v880
    %1116 = vmatpush.bf16.msra.mxu0 %v877
    %1117 = vmatpush.bf16.msra.mxu0 %v874
    %1118 = vmatpush.bf16.msra.mxu0 %v871
    %1119 = vmatpush.bf16.msra.mxu0 %v868
    %1120 = vmatmul.bf16.gmra.mxu0 %v90
    %v1121 = vpop.f32.mrf.mxu0
    %v1122 = vadd.f32 %v1109, %v1121
    %v1123 = vpop.f32.mrf.mxu0
    %1124 = vdwg.mxu0
    %1125 = vmatpush.bf16.msra.mxu0 %v913
    %1126 = vmatpush.bf16.msra.mxu0 %v910
    %1127 = vmatpush.bf16.msra.mxu0 %v907
    %1128 = vmatpush.bf16.msra.mxu0 %v904
    %1129 = vmatpush.bf16.msra.mxu0 %v901
    %1130 = vmatpush.bf16.msra.mxu0 %v898
    %1131 = vmatpush.bf16.msra.mxu0 %v895
    %1132 = vmatpush.bf16.msra.mxu0 %v892
    %1133 = vmatmul.bf16.gmra.mxu0 %v91
    %v1134 = vpop.f32.mrf.mxu0
    %v1135 = vadd.f32 %v1122, %v1134
    %v1136 = vpop.f32.mrf.mxu0
    %1137 = vdwg.mxu0
    %1138 = vmatpush.bf16.msra.mxu0 %v794
    %1139 = vmatpush.bf16.msra.mxu0 %v791
    %1140 = vmatpush.bf16.msra.mxu0 %v788
    %1141 = vmatpush.bf16.msra.mxu0 %v785
    %1142 = vmatpush.bf16.msra.mxu0 %v782
    %1143 = vmatpush.bf16.msra.mxu0 %v779
    %1144 = vmatpush.bf16.msra.mxu0 %v776
    %1145 = vmatpush.bf16.msra.mxu0 %v773
    %1146 = vmatmul.bf16.gmra.mxu0 %v86
    %v1147 = vpop.f32.mrf.mxu0
    %v1148 = vadd.f32 %v287, %v1147
    %v1149 = vpop.f32.mrf.mxu0
    %1150 = vdwg.mxu0
    %1151 = vmatpush.bf16.msra.mxu0 %v818
    %1152 = vmatpush.bf16.msra.mxu0 %v815
    %1153 = vmatpush.bf16.msra.mxu0 %v812
    %1154 = vmatpush.bf16.msra.mxu0 %v809
    %1155 = vmatpush.bf16.msra.mxu0 %v806
    %1156 = vmatpush.bf16.msra.mxu0 %v803
    %1157 = vmatpush.bf16.msra.mxu0 %v800
    %1158 = vmatpush.bf16.msra.mxu0 %v797
    %1159 = vmatmul.bf16.gmra.mxu0 %v87
    %v1160 = vpop.f32.mrf.mxu0
    %v1161 = vadd.f32 %v1148, %v1160
    %v1162 = vpop.f32.mrf.mxu0
    %1163 = vdwg.mxu0
    %1164 = vmatpush.bf16.msra.mxu0 %v842
    %1165 = vmatpush.bf16.msra.mxu0 %v839
    %1166 = vmatpush.bf16.msra.mxu0 %v836
    %1167 = vmatpush.bf16.msra.mxu0 %v833
    %1168 = vmatpush.bf16.msra.mxu0 %v830
    %1169 = vmatpush.bf16.msra.mxu0 %v827
    %1170 = vmatpush.bf16.msra.mxu0 %v824
    %1171 = vmatpush.bf16.msra.mxu0 %v821
    %1172 = vmatmul.bf16.gmra.mxu0 %v88
    %v1173 = vpop.f32.mrf.mxu0
    %v1174 = vadd.f32 %v1161, %v1173
    %v1175 = vpop.f32.mrf.mxu0
    %1176 = vdwg.mxu0
    %1177 = vmatpush.bf16.msra.mxu0 %v866
    %1178 = vmatpush.bf16.msra.mxu0 %v863
    %1179 = vmatpush.bf16.msra.mxu0 %v860
    %1180 = vmatpush.bf16.msra.mxu0 %v857
    %1181 = vmatpush.bf16.msra.mxu0 %v854
    %1182 = vmatpush.bf16.msra.mxu0 %v851
    %1183 = vmatpush.bf16.msra.mxu0 %v848
    %1184 = vmatpush.bf16.msra.mxu0 %v845
    %1185 = vmatmul.bf16.gmra.mxu0 %v89
    %v1186 = vpop.f32.mrf.mxu0
    %v1187 = vadd.f32 %v1174, %v1186
    %v1188 = vpop.f32.mrf.mxu0
    %1189 = vdwg.mxu0
    %1190 = vmatpush.bf16.msra.mxu0 %v890
    %1191 = vmatpush.bf16.msra.mxu0 %v887
    %1192 = vmatpush.bf16.msra.mxu0 %v884
    %1193 = vmatpush.bf16.msra.mxu0 %v881
    %1194 = vmatpush.bf16.msra.mxu0 %v878
    %1195 = vmatpush.bf16.msra.mxu0 %v875
    %1196 = vmatpush.bf16.msra.mxu0 %v872
    %1197 = vmatpush.bf16.msra.mxu0 %v869
    %1198 = vmatmul.bf16.gmra.mxu0 %v90
    %v1199 = vpop.f32.mrf.mxu0
    %v1200 = vadd.f32 %v1187, %v1199
    %v1201 = vpop.f32.mrf.mxu0
    %1202 = vdwg.mxu0
    %1203 = vmatpush.bf16.msra.mxu0 %v914
    %1204 = vmatpush.bf16.msra.mxu0 %v911
    %1205 = vmatpush.bf16.msra.mxu0 %v908
    %1206 = vmatpush.bf16.msra.mxu0 %v905
    %1207 = vmatpush.bf16.msra.mxu0 %v902
    %1208 = vmatpush.bf16.msra.mxu0 %v899
    %1209 = vmatpush.bf16.msra.mxu0 %v896
    %1210 = vmatpush.bf16.msra.mxu0 %v893
    %1211 = vmatmul.bf16.gmra.mxu0 %v91
    %v1212 = vpop.f32.mrf.mxu0
    %v1213 = vadd.f32 %v1200, %v1212
    %v1214 = vpop.f32.mrf.mxu0
    %1215 = vdwg.mxu0
    %1216 = vmatpush.bf16.msra.mxu0 %v795
    %1217 = vmatpush.bf16.msra.mxu0 %v792
    %1218 = vmatpush.bf16.msra.mxu0 %v789
    %1219 = vmatpush.bf16.msra.mxu0 %v786
    %1220 = vmatpush.bf16.msra.mxu0 %v783
    %1221 = vmatpush.bf16.msra.mxu0 %v780
    %1222 = vmatpush.bf16.msra.mxu0 %v777
    %1223 = vmatpush.bf16.msra.mxu0 %v774
    %1224 = vmatmul.bf16.gmra.mxu0 %v86
    %v1225 = vpop.f32.mrf.mxu0
    %v1226 = vadd.f32 %v288, %v1225
    %v1227 = vpop.f32.mrf.mxu0
    %1228 = vdwg.mxu0
    %1229 = vmatpush.bf16.msra.mxu0 %v819
    %1230 = vmatpush.bf16.msra.mxu0 %v816
    %1231 = vmatpush.bf16.msra.mxu0 %v813
    %1232 = vmatpush.bf16.msra.mxu0 %v810
    %1233 = vmatpush.bf16.msra.mxu0 %v807
    %1234 = vmatpush.bf16.msra.mxu0 %v804
    %1235 = vmatpush.bf16.msra.mxu0 %v801
    %1236 = vmatpush.bf16.msra.mxu0 %v798
    %1237 = vmatmul.bf16.gmra.mxu0 %v87
    %v1238 = vpop.f32.mrf.mxu0
    %v1239 = vadd.f32 %v1226, %v1238
    %v1240 = vpop.f32.mrf.mxu0
    %1241 = vdwg.mxu0
    %1242 = vmatpush.bf16.msra.mxu0 %v843
    %1243 = vmatpush.bf16.msra.mxu0 %v840
    %1244 = vmatpush.bf16.msra.mxu0 %v837
    %1245 = vmatpush.bf16.msra.mxu0 %v834
    %1246 = vmatpush.bf16.msra.mxu0 %v831
    %1247 = vmatpush.bf16.msra.mxu0 %v828
    %1248 = vmatpush.bf16.msra.mxu0 %v825
    %1249 = vmatpush.bf16.msra.mxu0 %v822
    %1250 = vmatmul.bf16.gmra.mxu0 %v88
    %v1251 = vpop.f32.mrf.mxu0
    %v1252 = vadd.f32 %v1239, %v1251
    %v1253 = vpop.f32.mrf.mxu0
    %1254 = vdwg.mxu0
    %1255 = vmatpush.bf16.msra.mxu0 %v867
    %1256 = vmatpush.bf16.msra.mxu0 %v864
    %1257 = vmatpush.bf16.msra.mxu0 %v861
    %1258 = vmatpush.bf16.msra.mxu0 %v858
    %1259 = vmatpush.bf16.msra.mxu0 %v855
    %1260 = vmatpush.bf16.msra.mxu0 %v852
    %1261 = vmatpush.bf16.msra.mxu0 %v849
    %1262 = vmatpush.bf16.msra.mxu0 %v846
    %1263 = vmatmul.bf16.gmra.mxu0 %v89
    %v1264 = vpop.f32.mrf.mxu0
    %v1265 = vadd.f32 %v1252, %v1264
    %v1266 = vpop.f32.mrf.mxu0
    %1267 = vdwg.mxu0
    %1268 = vmatpush.bf16.msra.mxu0 %v891
    %1269 = vmatpush.bf16.msra.mxu0 %v888
    %1270 = vmatpush.bf16.msra.mxu0 %v885
    %1271 = vmatpush.bf16.msra.mxu0 %v882
    %1272 = vmatpush.bf16.msra.mxu0 %v879
    %1273 = vmatpush.bf16.msra.mxu0 %v876
    %1274 = vmatpush.bf16.msra.mxu0 %v873
    %1275 = vmatpush.bf16.msra.mxu0 %v870
    %1276 = vmatmul.bf16.gmra.mxu0 %v90
    %v1277 = vpop.f32.mrf.mxu0
    %v1278 = vadd.f32 %v1265, %v1277
    %v1279 = vpop.f32.mrf.mxu0
    %1280 = vdwg.mxu0
    %1281 = vmatpush.bf16.msra.mxu0 %v915
    %1282 = vmatpush.bf16.msra.mxu0 %v912
    %1283 = vmatpush.bf16.msra.mxu0 %v909
    %1284 = vmatpush.bf16.msra.mxu0 %v906
    %1285 = vmatpush.bf16.msra.mxu0 %v903
    %1286 = vmatpush.bf16.msra.mxu0 %v900
    %1287 = vmatpush.bf16.msra.mxu0 %v897
    %1288 = vmatpush.bf16.msra.mxu0 %v894
    %1289 = vmatmul.bf16.gmra.mxu0 %v91
    %v1290 = vpop.f32.mrf.mxu0
    %v1291 = vadd.f32 %v1278, %v1290
    %v1292 = vpop.f32.mrf.mxu0
    %1293 = vdwg.mxu0
    %v1294 = vmax.f32 %v1135, 0.0
    %v1295 = vmax.f32 %v1213, 0.0
    %v1296 = vmax.f32 %v1291, 0.0
    %v1297 = vpack.c.bf16 %v1294, %v1294
    %v1298 = vpack.c.bf16 %v1295, %v1295
    %v1299 = vpack.c.bf16 %v1296, %v1296
    %v1300 = vld [vmem:[#allocation8] sm:$0xf]
    %v1301 = vld [vmem:[#allocation8 + $0x4] sm:$0xf]
    %v1302 = vld [vmem:[#allocation8 + $0x8] sm:$0xf]
    %v1303 = vld [vmem:[#allocation8 + $0xc] sm:$0xf]
    %v1304 = vld [vmem:[#allocation8 + $0x10] sm:$0xf]
    %v1305 = vld [vmem:[#allocation8 + $0x14] sm:$0xf]
    %v1306 = vld [vmem:[#allocation8 + $0x18] sm:$0xf]
    %v1307 = vld [vmem:[#allocation8 + $0x1c] sm:$0xf]
    %v1308 = vld [vmem:[#allocation8 + $0x20] sm:$0xf]
    %v1309 = vld [vmem:[#allocation8 + $0x24] sm:$0xf]
    %v1310 = vld [vmem:[#allocation8 + $0x28] sm:$0xf]
    %v1311 = vld [vmem:[#allocation8 + $0x2c] sm:$0xf]
    %v1312 = vld [vmem:[#allocation8 + $0x30] sm:$0xf]
    %v1313 = vld [vmem:[#allocation8 + $0x34] sm:$0xf]
    %v1314 = vld [vmem:[#allocation8 + $0x38] sm:$0xf]
    %v1315 = vld [vmem:[#allocation8 + $0x3c] sm:$0xf]
    %v1316 = vld [vmem:[#allocation8 + $0x40] sm:$0xf]
    %v1317 = vld [vmem:[#allocation8 + $0x44] sm:$0xf]
    %v1318 = vld [vmem:[#allocation8 + $0x48] sm:$0xf]
    %v1319 = vld [vmem:[#allocation8 + $0x4c] sm:$0xf]
    %v1320 = vld [vmem:[#allocation8 + $0x50] sm:$0xf]
    %v1321 = vld [vmem:[#allocation8 + $0x54] sm:$0xf]
    %v1322 = vld [vmem:[#allocation8 + $0x58] sm:$0xf]
    %v1323 = vld [vmem:[#allocation8 + $0x5c] sm:$0xf]
    %v1324 = vld [vmem:[#allocation8 + $0x60] sm:$0xf]
    %v1325 = vld [vmem:[#allocation8 + $0x64] sm:$0xf]
    %v1326 = vld [vmem:[#allocation8 + $0x68] sm:$0xf]
    %v1327 = vld [vmem:[#allocation8 + $0x6c] sm:$0xf]
    %v1328 = vld [vmem:[#allocation8 + $0x70] sm:$0xf]
    %v1329 = vld [vmem:[#allocation8 + $0x74] sm:$0xf]
    %v1330 = vld [vmem:[#allocation8 + $0x78] sm:$0xf]
    %v1331 = vld [vmem:[#allocation8 + $0x7c] sm:$0xf]
    %v1332 = vld [vmem:[#allocation8 + $0x80] sm:$0xf]
    %v1333 = vld [vmem:[#allocation8 + $0x84] sm:$0xf]
    %v1334 = vld [vmem:[#allocation8 + $0x88] sm:$0xf]
    %v1335 = vld [vmem:[#allocation8 + $0x8c] sm:$0xf]
    %v1336 = vld [vmem:[#allocation8 + $0x90] sm:$0xf]
    %v1337 = vld [vmem:[#allocation8 + $0x94] sm:$0xf]
    %v1338 = vld [vmem:[#allocation8 + $0x98] sm:$0xf]
    %v1339 = vld [vmem:[#allocation8 + $0x9c] sm:$0xf]
    %v1340 = vld [vmem:[#allocation8 + $0xa0] sm:$0xf]
    %v1341 = vld [vmem:[#allocation8 + $0xa4] sm:$0xf]
    %v1342 = vld [vmem:[#allocation8 + $0xa8] sm:$0xf]
    %v1343 = vld [vmem:[#allocation8 + $0xac] sm:$0xf]
    %v1344 = vld [vmem:[#allocation8 + $0xb0] sm:$0xf]
    %v1345 = vld [vmem:[#allocation8 + $0xb4] sm:$0xf]
    %v1346 = vld [vmem:[#allocation8 + $0xb8] sm:$0xf]
    %v1347 = vld [vmem:[#allocation8 + $0xbc] sm:$0xf]
    %v1348 = vld [vmem:[%s4] sm:$0x1]
    %v1350 = vperm.slane %v1348, 0
    %v1400 = vunpack.c.l.b16 %v1300
    %v1401 = vunpack.c.l.b16 %v1301
    %v1402 = vunpack.c.l.b16 %v1302
    %v1403 = vunpack.c.l.b16 %v1303
    %v1404 = vunpack.c.l.b16 %v1304
    %v1405 = vunpack.c.l.b16 %v1305
    %v1406 = vunpack.c.l.b16 %v1306
    %v1407 = vunpack.c.l.b16 %v1307
    %v1408 = vunpack.c.l.b16 %v1308
    %v1409 = vunpack.c.l.b16 %v1309
    %v1410 = vunpack.c.l.b16 %v1310
    %v1411 = vunpack.c.l.b16 %v1311
    %v1412 = vunpack.c.l.b16 %v1312
    %v1413 = vunpack.c.l.b16 %v1313
    %v1414 = vunpack.c.l.b16 %v1314
    %v1415 = vunpack.c.l.b16 %v1315
    %v1416 = vunpack.c.l.b16 %v1316
    %v1417 = vunpack.c.l.b16 %v1317
    %v1418 = vunpack.c.l.b16 %v1318
    %v1419 = vunpack.c.l.b16 %v1319
    %v1420 = vunpack.c.l.b16 %v1320
    %v1421 = vunpack.c.l.b16 %v1321
    %v1422 = vunpack.c.l.b16 %v1322
    %v1423 = vunpack.c.l.b16 %v1323
    %v1424 = vunpack.c.l.b16 %v1324
    %v1425 = vunpack.c.l.b16 %v1325
    %v1426 = vunpack.c.l.b16 %v1326
    %v1427 = vunpack.c.l.b16 %v1327
    %v1428 = vunpack.c.l.b16 %v1328
    %v1429 = vunpack.c.l.b16 %v1329
    %v1430 = vunpack.c.l.b16 %v1330
    %v1431 = vunpack.c.l.b16 %v1331
    %v1432 = vunpack.c.l.b16 %v1332
    %v1433 = vunpack.c.l.b16 %v1333
    %v1434 = vunpack.c.l.b16 %v1334
    %v1435 = vunpack.c.l.b16 %v1335
    %v1436 = vunpack.c.l.b16 %v1336
    %v1437 = vunpack.c.l.b16 %v1337
    %v1438 = vunpack.c.l.b16 %v1338
    %v1439 = vunpack.c.l.b16 %v1339
    %v1440 = vunpack.c.l.b16 %v1340
    %v1441 = vunpack.c.l.b16 %v1341
    %v1442 = vunpack.c.l.b16 %v1342
    %v1443 = vunpack.c.l.b16 %v1343
    %v1444 = vunpack.c.l.b16 %v1344
    %v1445 = vunpack.c.l.b16 %v1345
    %v1446 = vunpack.c.l.b16 %v1346
    %v1447 = vunpack.c.l.b16 %v1347
    %v1448 = vpack.c.b16 %v1401, %v1400
    %v1449 = vpack.c.b16 %v1403, %v1402
    %v1450 = vpack.c.b16 %v1405, %v1404
    %v1451 = vpack.c.b16 %v1407, %v1406
    %v1452 = vpack.c.b16 %v1409, %v1408
    %v1453 = vpack.c.b16 %v1411, %v1410
    %v1454 = vpack.c.b16 %v1413, %v1412
    %v1455 = vpack.c.b16 %v1415, %v1414
    %v1456 = vpack.c.b16 %v1417, %v1416
    %v1457 = vpack.c.b16 %v1419, %v1418
    %v1458 = vpack.c.b16 %v1421, %v1420
    %v1459 = vpack.c.b16 %v1423, %v1422
    %v1460 = vpack.c.b16 %v1425, %v1424
    %v1461 = vpack.c.b16 %v1427, %v1426
    %v1462 = vpack.c.b16 %v1429, %v1428
    %v1463 = vpack.c.b16 %v1431, %v1430
    %v1464 = vpack.c.b16 %v1433, %v1432
    %v1465 = vpack.c.b16 %v1435, %v1434
    %v1466 = vpack.c.b16 %v1437, %v1436
    %v1467 = vpack.c.b16 %v1439, %v1438
    %v1468 = vpack.c.b16 %v1441, %v1440
    %v1469 = vpack.c.b16 %v1443, %v1442
    %v1470 = vpack.c.b16 %v1445, %v1444
    %v1471 = vpack.c.b16 %v1447, %v1446
    %1496 = vmatpush.bf16.msra.mxu0 %v1455
    %1497 = vmatpush.bf16.msra.mxu0 %v1454
    %1498 = vmatpush.bf16.msra.mxu0 %v1453
    %1499 = vmatpush.bf16.msra.mxu0 %v1452
    %1500 = vmatpush.bf16.msra.mxu0 %v1451
    %1501 = vmatpush.bf16.msra.mxu0 %v1450
    %1502 = vmatpush.bf16.msra.mxu0 %v1449
    %1503 = vmatpush.bf16.msra.mxu0 %v1448
    %1504 = vmatmul.bf16.gmra.mxu0 %v1297
    %v1505 = vpop.f32.mrf.mxu0
    %v1506 = vadd.f32 %v1350, %v1505
    %v1507 = vpop.f32.mrf.mxu0
    %1508 = vdwg.mxu0
    %1509 = vmatpush.bf16.msra.mxu0 %v1463
    %1510 = vmatpush.bf16.msra.mxu0 %v1462
    %1511 = vmatpush.bf16.msra.mxu0 %v1461
    %1512 = vmatpush.bf16.msra.mxu0 %v1460
    %1513 = vmatpush.bf16.msra.mxu0 %v1459
    %1514 = vmatpush.bf16.msra.mxu0 %v1458
    %1515 = vmatpush.bf16.msra.mxu0 %v1457
    %1516 = vmatpush.bf16.msra.mxu0 %v1456
    %1517 = vmatmul.bf16.gmra.mxu0 %v1298
    %v1518 = vpop.f32.mrf.mxu0
    %v1519 = vadd.f32 %v1506, %v1518
    %v1520 = vpop.f32.mrf.mxu0
    %1521 = vdwg.mxu0
    %1522 = vmatpush.bf16.msra.mxu0 %v1471
    %1523 = vmatpush.bf16.msra.mxu0 %v1470
    %1524 = vmatpush.bf16.msra.mxu0 %v1469
    %1525 = vmatpush.bf16.msra.mxu0 %v1468
    %1526 = vmatpush.bf16.msra.mxu0 %v1467
    %1527 = vmatpush.bf16.msra.mxu0 %v1466
    %1528 = vmatpush.bf16.msra.mxu0 %v1465
    %1529 = vmatpush.bf16.msra.mxu0 %v1464
    %1530 = vmatmul.bf16.gmra.mxu0 %v1299
    %v1531 = vpop.f32.mrf.mxu0
    %v1532 = vadd.f32 %v1519, %v1531
    %v1533 = vpop.f32.mrf.mxu0
    %1534 = vdwg.mxu0
    %1535 = vst [vmem:[#allocation10] sm:$0xff] %v1532
    // Predicated region
    $region38: #{tpu_custom_call.1} parent=1 // pred_check
      _
    $region39: #{tpu_custom_call.1} parent=1 // pred_check_branch
      %1537 = sbr.rel (0) target = $region41
    $region40: #{tpu_custom_call.1} parent=1 // pred_region
      %1539 = vsyncadd [#allocation4], 0
      %s1541 = sshll.u32 [#allocation10], 4
      %s1542 = int_to_ptr.vmem [resolvable:$true] %s1541
      %s1543 = sshll.u32 %s5, 4
      %s1544 = int_to_ptr.hbm [resolvable:$true] %s1543
      %1546 = dma.vmem_to_hbm [thread:$0]  %s1542, 128, %s1544, [#allocation4]
    $region41: #{tpu_custom_call.1} parent=1 // pred_fallthru
      _
    // Predicated region
    $region42: #{tpu_custom_call.1} parent=1 // pred_check
      _
    $region43: #{tpu_custom_call.1} parent=1 // pred_check_branch
      %1548 = sbr.rel (0) target = $region45
    $region44: #{tpu_custom_call.1} parent=1 // pred_region
      %1550 = dma.done [#allocation4], 128
    $region45: #{tpu_custom_call.1} parent=1 // pred_fallthru
      _
    %1551 = vsyncpa [#allocation3], 1
    %1552 = vsyncpa [#allocation6], 1
    %1553 = vsyncpa [#allocation9], 1
    %1554 = vsyncpa [#allocation4], 1

</llo_original>
